<compile_context>
chip_gen: v7x
topology: tpu7x:2x2x1
jax: 0.10.0
libtpu: 0.0.40
codegen_flags: <defaults>
</compile_context>

<pallas_src>
import functools

import numpy as np
import jax
import jax.numpy as jnp
from jax import lax
from jax.experimental import pallas as pl
from jax.experimental.pallas import tpu as pltpu

L2_REG = 0.02
_NEG = -1e30          # effectively -inf for masked logits (exp underflows to 0)
_SMALL_N_XLA = 64     # below this, fused XLA beats Pallas dispatch overhead


def _round_up(x, m):
    return ((x + m - 1) // m) * m


def _tpu_generation():
    try:
        kind = jax.devices()[0].device_kind.lower()
    except Exception:
        return 0
    for g in (7, 6, 5, 4, 3, 2):
        if ("v%d" % g) in kind or ("tpu%d" % g) in kind:
            return g
    return 0


def _vmem_physical_bytes(gen):
    try:
        return int(pltpu.get_tpu_info().vmem_capacity_bytes)
    except Exception:
        # v7x: 64 MiB per TensorCore; v5e / v6e (and older): 128 MiB.
        return (64 if gen >= 7 else 128) * 1024 * 1024


# -----------------------------------------------------------------------------
# Kernel
# -----------------------------------------------------------------------------
def _n_pair_loss_kernel(n_ref, a_ref, diag_ref, p_ref, out_ref, m_sc, l_sc,
                        *, tm, tn):
    """One (row-tile i, col-tile j) step.

    x[i, j] = a_i . (p_j - p_i) = S[i, j] - S[i, i]          for j != i,
    out_i   = log(1 + sum_{j != i} exp(x[i, j])),
    accumulated over column tiles with an online logsumexp; the "+1" is the
    implicit 0-logit folded into the m=0 / l=1 init.  S[i, i] (diag_ref) is
    precomputed in f32 by the wrapper.
    """
    i = pl.program_id(0)
    j = pl.program_id(1)
    num_j = pl.num_programs(1)
    n_real = n_ref[0]

    @pl.when(j == 0)
    def _init():
        m_sc[...] = jnp.zeros_like(m_sc)   # running max (0-logit included)
        l_sc[...] = jnp.ones_like(l_sc)    # running sum: exp(0 - 0) = 1

    # One MXU matmul: (tm, d) x (tn, d)^T -> (tm, tn), f32 accumulation.
    s = lax.dot_general(a_ref[...], p_ref[...],
                        (((1,), (1,)), ((), ())),
                        preferred_element_type=jnp.float32)
    x = s - diag_ref[...]                                   # (tm, tn)

    # Mask own positive (diagonal) and padded columns.  Cheap VPU filler; only
    # worth gating per-tile if VALU ever becomes the binding slot.
    row_g = i * tm + lax.broadcasted_iota(jnp.int32, (tm, tn), 0)
    col_g = j * tn + lax.broadcasted_iota(jnp.int32, (tm, tn), 1)
    invalid = (col_g == row_g) | (col_g >= n_real)
    x = jnp.where(invalid, jnp.float32(_NEG), x)

    m_prev = m_sc[...]
    m_new = jnp.maximum(m_prev, jnp.max(x, axis=1, keepdims=True))
    l_sc[...] = (l_sc[...] * jnp.exp(m_prev - m_new)
                 + jnp.sum(jnp.exp(x - m_new), axis=1, keepdims=True))
    m_sc[...] = m_new

    @pl.when(j == num_j - 1)
    def _finalize():
        out_ref[...] = m_sc[...] + jnp.log(l_sc[...])       # log(1 + sum exp x)


# -----------------------------------------------------------------------------
# Wrapper
# -----------------------------------------------------------------------------
def n_pair_loss_pallas(anchors, positives, l2_reg=L2_REG, matmul_dtype=None):
    """anchors, positives: (n, D). Returns scalar N-pair loss + L2 regularizer."""
    n, d = anchors.shape
    gen = _tpu_generation()
    phys_vmem = _vmem_physical_bytes(gen)

    # bf16 operands on bf16-native MXUs (v6e / v7x); accumulation & epilogue
    # stay f32 (intentional accuracy/speed trade, per review).
    if matmul_dtype is None:
        if gen >= 6 and anchors.dtype == jnp.float32:
            matmul_dtype = jnp.bfloat16
        else:
            matmul_dtype = anchors.dtype
    op_bytes = jnp.dtype(matmul_dtype).itemsize

    d_pad = _round_up(d, 128)                 # lane-aligned contraction dim
    sub = 16 if op_bytes == 2 else 8          # bf16 packs 2 rows / sublane

    # Per-generation scoped-VMEM limit (leave headroom below physical).
    if phys_vmem >= 128 * 1024 * 1024:
        vmem_limit = 96 * 1024 * 1024
    else:                                     # v7x: 64 MiB / TensorCore
        vmem_limit = 44 * 1024 * 1024
    vmem_limit = min(vmem_limit, int(phys_vmem * 3 // 4))

    mxu_tile = 256 if gen >= 6 else 128       # match 256x256 MXU on v6e/v7x

    if n <= mxu_tile:
        n_pad = _round_up(n, sub)
        tm = tn = n_pad                       # single tile, P trivially resident
    else:
        n_pad = _round_up(n, mxu_tile)
        # Residency check: double-buffered P block + double-buffered anchor tile.
        p_res_bytes = 2 * n_pad * d_pad * op_bytes
        a_tile_bytes = 2 * mxu_tile * d_pad * op_bytes
        if p_res_bytes + a_tile_bytes + (1 << 20) <= vmem_limit:
            tm, tn = mxu_tile, n_pad          # P stays resident (col index constant)
        else:
            # Streamed column tiles: raise tm so flop/byte on the P stream
            # clears the roofline knee (intensity ~ tm / op_bytes * 2).
            tn = mxu_tile
            tm = 128
            for tm_cand in (512, 256, 128):
                if (n_pad % tm_cand == 0 and
                        2 * (tm_cand + tn) * d_pad * op_bytes + (1 << 20) <= vmem_limit):
                    tm = tm_cand
                    break

    gm, gn = n_pad // tm, n_pad // tn

    # Precompute in f32 on the UNPADDED arrays: diag = S[i,i] and the L2 term.
    a_f32 = anchors.astype(jnp.float32)
    p_f32 = positives.astype(jnp.float32)
    diag = jnp.sum(a_f32 * p_f32, axis=1, keepdims=True)            # (n, 1)
    l2 = jnp.sum(a_f32 * a_f32 + p_f32 * p_f32) / jnp.float32(n)

    a_op = anchors.astype(matmul_dtype)
    p_op = positives.astype(matmul_dtype)
    if n_pad != n or d_pad != d:              # only pad when actually needed
        a_op = jnp.pad(a_op, ((0, n_pad - n), (0, d_pad - d)))
        p_op = jnp.pad(p_op, ((0, n_pad - n), (0, d_pad - d)))
    diag_p = jnp.pad(diag, ((0, n_pad - n), (0, 0))) if n_pad != n else diag

    # Cost estimate reflecting the actual column traffic (resident vs streamed).
    p_stream_factor = 1 if gn == 1 else gm
    cost = pl.CostEstimate(
        flops=2 * n_pad * n_pad * d_pad,
        transcendentals=n_pad * n_pad + n_pad,
        bytes_accessed=(n_pad * d_pad * op_bytes                    # anchors
                        + p_stream_factor * n_pad * d_pad * op_bytes  # P stream
                        + 2 * n_pad * 4),                            # diag + out
    )

    kernel = functools.partial(_n_pair_loss_kernel, tm=tm, tn=tn)
    per_row = pl.pallas_call(
        kernel,
        out_shape=jax.ShapeDtypeStruct((n_pad, 1), jnp.float32),
        grid_spec=pltpu.PrefetchScalarGridSpec(
            num_scalar_prefetch=1,
            grid=(gm, gn),
            in_specs=[
                pl.BlockSpec((tm, d_pad), lambda i, j, n_r: (i, 0)),  # anchors row tile
                pl.BlockSpec((tm, 1),     lambda i, j, n_r: (i, 0)),  # precomputed diag
                pl.BlockSpec((tn, d_pad), lambda i, j, n_r: (j, 0)),  # positives col tile
            ],
            out_specs=pl.BlockSpec((tm, 1), lambda i, j, n_r: (i, 0)),
            scratch_shapes=[pltpu.VMEM((tm, 1), jnp.float32)] * 2,    # m, l
        ),
        compiler_params=pltpu.CompilerParams(
            dimension_semantics=("parallel", "arbitrary"),
            vmem_limit_bytes=vmem_limit,
        ),
        cost_estimate=cost,
    )(jnp.array([n], dtype=jnp.int32), a_op, diag_p, p_op)

    # Trivial final reduction of n scalars (plain JAX); padded rows dropped.
    npair = jnp.sum(per_row[:n, 0]) / jnp.float32(n)
    return npair + jnp.float32(l2_reg) * l2


def _n_pair_loss_xla(anchors, positives, l2_reg=L2_REG):
    """Fused-XLA fast path for tiny n (kernel dispatch would dominate)."""
    a = anchors.astype(jnp.float32)
    p = positives.astype(jnp.float32)
    n = a.shape[0]
    s = a @ p.T
    x = s - jnp.diagonal(s)[:, None]
    x = jnp.where(jnp.eye(n, dtype=bool), jnp.float32(_NEG), x)
    npair = jnp.mean(jnp.log1p(jnp.sum(jnp.exp(x), axis=1)))
    l2 = jnp.sum(a * a + p * p) / jnp.float32(n)
    return npair + jnp.float32(l2_reg) * l2


def n_pair_loss(anchors, positives, l2_reg=L2_REG, *, force_pallas=False,
                matmul_dtype=None):
    n = anchors.shape[0]
    if n <= _SMALL_N_XLA and not force_pallas:
        return _n_pair_loss_xla(anchors, positives, l2_reg)
    return n_pair_loss_pallas(anchors, positives, l2_reg, matmul_dtype=matmul_dtype)


# -----------------------------------------------------------------------------
# Host-side pair selection (data-dependent; mirrors the torch module)
# -----------------------------------------------------------------------------
def get_n_pairs(labels_np, rng):
    n_pairs = []
    for label in sorted(set(labels_np.tolist())):
        label_indices = np.where(labels_np == label)[0]
        if len(label_indices) < 2:
            continue
        anchor, positive = rng.choice(label_indices, 2, replace=False)
        n_pairs.append([anchor, positive])
    n_pairs = np.array(n_pairs, dtype=np.int64)
    n_negatives = []
    for i in range(len(n_pairs)):
        negative = np.concatenate([n_pairs[:i, 1], n_pairs[i + 1:, 1]])
        n_negatives.append(negative)
    n_negatives = np.array(n_negatives, dtype=np.int64)
    return n_pairs, n_negatives


def n_pair_loss_forward(embeddings, labels_np, rng, force_pallas=False):
    # TODO(synk): the per-label np.random.choice pair selection is inherently
    # host-side / data-dependent and stays in NumPy (as in the torch module).
    n_pairs, _ = get_n_pairs(labels_np, rng)
    if len(n_pairs) == 0:
        return jnp.float32(0.0)
    anchors = embeddings[n_pairs[:, 0]]       # (n, D)
    positives = embeddings[n_pairs[:, 1]]     # (n, D)
    return n_pair_loss(anchors, positives, force_pallas=force_pallas)


def _reference_loss(anchors, positives, negatives, l2_reg=L2_REG):
    # Pure-numpy mirror of the original torch math (negatives-based formula).
    a = np.asarray(anchors, dtype=np.float32)
    p = np.asarray(positives, dtype=np.float32)
    ng = np.asarray(negatives, dtype=np.float32)
    x = np.einsum("nd,nmd->nm", a, ng - p[:, None, :])
    s = np.sum(np.exp(x), axis=1)
    npair = np.mean(np.log1p(s))
    l2 = np.sum(a * a + p * p) / a.shape[0]
    return npair + l2_reg * l2


if __name__ == "__main__":
    key = jax.random.PRNGKey(0)
    n_classes, d = 12, 40
    B = 2 * n_classes                                   # 12 classes x 2 samples
    embeddings = jax.random.normal(key, (B, d), dtype=jnp.float32) * 0.1
    labels_np = np.repeat(np.arange(n_classes), 2).astype(np.int64)

    rng = np.random.default_rng(0)                      # deterministic pair pick
    n_pairs, n_negatives = get_n_pairs(labels_np, rng)
    emb_np = np.asarray(embeddings)
    ref = _reference_loss(emb_np[n_pairs[:, 0]], emb_np[n_pairs[:, 1]],
                          emb_np[n_negatives])

    anchors = embeddings[n_pairs[:, 0]]
    positives = embeddings[n_pairs[:, 1]]

    # 1) auto dispatch: tiny n -> fused-XLA fast path.
    loss_fast = jax.block_until_ready(n_pair_loss(anchors, positives))
    assert np.allclose(float(loss_fast), ref, rtol=1e-3, atol=1e-4), \
        (float(loss_fast), ref)

    # 2) Pallas kernel path (forced here since the demo n is tiny); tolerance
    #    covers the bf16-operand matmul used on bf16-native MXUs.
    loss_pallas = jax.block_until_ready(
        n_pair_loss(anchors, positives, force_pallas=True))
    assert np.allclose(float(loss_pallas), ref, rtol=3e-3, atol=1e-3), \
        (float(loss_pallas), ref)

    print("KERNEL_OK")
</pallas_src>

<mosaic_0001>
module attributes {stable_mosaic.version = 11 : i64} {
  func.func @_n_pair_loss_kernel(%arg0: i32, %arg1: i32, %arg2: memref<1xi32, #tpu.memory_space<smem>>, %arg3: memref<16x128xf32, #tpu.memory_space<vmem>>, %arg4: memref<16x1xf32, #tpu.memory_space<vmem>>, %arg5: memref<16x128xf32, #tpu.memory_space<vmem>>, %arg6: memref<16x1xf32, #tpu.memory_space<vmem>>, %arg7: memref<16x1xf32, #tpu.memory_space<vmem>>, %arg8: memref<16x1xf32, #tpu.memory_space<vmem>>) attributes {dimension_semantics = [#tpu.dimension_semantics<parallel>, #tpu.dimension_semantics<arbitrary>], iteration_bounds = array<i64: 1, 1>, scalar_prefetch = 1 : i64, scratch_operands = 2 : i64, tpu.core_type = #tpu.core_type<tc>, window_params = [{transform_indices = @transform_0, window_bounds = array<i64: 16, 128>}, {transform_indices = @transform_1, window_bounds = array<i64: 16, 1>}, {transform_indices = @transform_2, window_bounds = array<i64: 16, 128>}, {transform_indices = @transform_3, window_bounds = array<i64: 16, 1>}]} {
    %c0 = arith.constant 0 : index
    %0 = memref.load %arg2[%c0] : memref<1xi32, #tpu.memory_space<smem>>
    %c0_i32 = arith.constant 0 : i32
    %1 = arith.cmpi eq, %arg1, %c0_i32 : i32
    %2 = arith.extui %1 : i1 to i32
    %c0_i32_0 = arith.constant 0 : i32
    %3 = arith.cmpi ne, %2, %c0_i32_0 : i32
    scf.if %3 {
      %cst_21 = arith.constant 0.000000e+00 : f32
      %43 = vector.broadcast %cst_21 : f32 to vector<16x1xf32>
      %c0_22 = arith.constant 0 : index
      %c0_23 = arith.constant 0 : index
      %44 = vector.load %arg7[%c0_22, %c0_23] : memref<16x1xf32, #tpu.memory_space<vmem>>, vector<16x1xf32>
      tpu.vector_store %arg7[%c0_22, %c0_23], %43 {strides = array<i32>} : memref<16x1xf32, #tpu.memory_space<vmem>>, vector<16x1xf32>,
      %cst_24 = arith.constant 1.000000e+00 : f32
      %45 = vector.broadcast %cst_24 : f32 to vector<16x1xf32>
      %c0_25 = arith.constant 0 : index
      %c0_26 = arith.constant 0 : index
      %46 = vector.load %arg8[%c0_25, %c0_26] : memref<16x1xf32, #tpu.memory_space<vmem>>, vector<16x1xf32>
      tpu.vector_store %arg8[%c0_25, %c0_26], %45 {strides = array<i32>} : memref<16x1xf32, #tpu.memory_space<vmem>>, vector<16x1xf32>,
    } else {
    }
    %c0_1 = arith.constant 0 : index
    %c0_2 = arith.constant 0 : index
    %4 = vector.load %arg3[%c0_1, %c0_2] : memref<16x128xf32, #tpu.memory_space<vmem>>, vector<16x128xf32>
    %c0_3 = arith.constant 0 : index
    %c0_4 = arith.constant 0 : index
    %5 = vector.load %arg5[%c0_3, %c0_4] : memref<16x128xf32, #tpu.memory_space<vmem>>, vector<16x128xf32>
    %cst = arith.constant dense<0.000000e+00> : vector<16x16xf32>
    %6 = tpu.matmul %4, %5, %cst {dimension_numbers = #tpu.dot_dimension_numbers<[1], [1], [0], [0], [0, 0, 1, 0], [], []>} : vector<16x128xf32>, vector<16x128xf32>, vector<16x16xf32> -> vector<16x16xf32>
    %c0_5 = arith.constant 0 : index
    %c0_6 = arith.constant 0 : index
    %7 = vector.load %arg4[%c0_5, %c0_6] : memref<16x1xf32, #tpu.memory_space<vmem>>, vector<16x1xf32>
    %8 = vector.broadcast %7 : vector<16x1xf32> to vector<16x16xf32>
    %9 = arith.subf %6, %8 : vector<16x16xf32>
    %c16_i32 = arith.constant 16 : i32
    %10 = arith.muli %arg0, %c16_i32 : i32
    %11 = tpu.iota {dimensions = array<i32: 0>} : vector<16x16xi32>
    %12 = vector.broadcast %10 : i32 to vector<16x16xi32>
    %13 = arith.addi %12, %11 : vector<16x16xi32>
    %c16_i32_7 = arith.constant 16 : i32
    %14 = arith.muli %arg1, %c16_i32_7 : i32
    %15 = tpu.iota {dimensions = array<i32: 1>} : vector<16x16xi32>
    %16 = vector.broadcast %14 : i32 to vector<16x16xi32>
    %17 = arith.addi %16, %15 : vector<16x16xi32>
    %18 = arith.cmpi eq, %17, %13 : vector<16x16xi32>
    %19 = vector.broadcast %0 : i32 to vector<16x16xi32>
    %20 = arith.cmpi sge, %17, %19 : vector<16x16xi32>
    %21 = arith.ori %18, %20 : vector<16x16xi1>
    %cst_8 = arith.constant -1.000000e+30 : f32
    %22 = vector.broadcast %cst_8 : f32 to vector<16x16xf32>
    %23 = arith.select %21, %22, %9 : vector<16x16xi1>, vector<16x16xf32>
    %c0_9 = arith.constant 0 : index
    %c0_10 = arith.constant 0 : index
    %24 = vector.load %arg7[%c0_9, %c0_10] : memref<16x1xf32, #tpu.memory_space<vmem>>, vector<16x1xf32>
    %cst_11 = arith.constant dense<0xFF800000> : vector<16xf32>
    %25 = vector.multi_reduction <maximumf>, %23, %cst_11 [1] : vector<16x16xf32> to vector<16xf32>
    %26 = vector.shape_cast %25 : vector<16xf32> to vector<16x1xf32>
    %27 = arith.maximumf %24, %26 : vector<16x1xf32>
    %c0_12 = arith.constant 0 : index
    %c0_13 = arith.constant 0 : index
    %28 = vector.load %arg8[%c0_12, %c0_13] : memref<16x1xf32, #tpu.memory_space<vmem>>, vector<16x1xf32>
    %29 = arith.subf %24, %27 : vector<16x1xf32>
    %30 = math.exp %29 : vector<16x1xf32>
    %31 = arith.mulf %28, %30 : vector<16x1xf32>
    %32 = vector.broadcast %27 : vector<16x1xf32> to vector<16x16xf32>
    %33 = arith.subf %23, %32 : vector<16x16xf32>
    %34 = math.exp %33 : vector<16x16xf32>
    %cst_14 = arith.constant dense<0.000000e+00> : vector<16xf32>
    %35 = vector.multi_reduction <add>, %34, %cst_14 [1] : vector<16x16xf32> to vector<16xf32>
    %36 = vector.shape_cast %35 : vector<16xf32> to vector<16x1xf32>
    %37 = arith.addf %31, %36 : vector<16x1xf32>
    %c0_15 = arith.constant 0 : index
    %c0_16 = arith.constant 0 : index
    %38 = vector.load %arg8[%c0_15, %c0_16] : memref<16x1xf32, #tpu.memory_space<vmem>>, vector<16x1xf32>
    tpu.vector_store %arg8[%c0_15, %c0_16], %37 {strides = array<i32>} : memref<16x1xf32, #tpu.memory_space<vmem>>, vector<16x1xf32>,
    %c0_17 = arith.constant 0 : index
    %c0_18 = arith.constant 0 : index
    %39 = vector.load %arg7[%c0_17, %c0_18] : memref<16x1xf32, #tpu.memory_space<vmem>>, vector<16x1xf32>
    tpu.vector_store %arg7[%c0_17, %c0_18], %27 {strides = array<i32>} : memref<16x1xf32, #tpu.memory_space<vmem>>, vector<16x1xf32>,
    %c0_i32_19 = arith.constant 0 : i32
    %40 = arith.cmpi eq, %arg1, %c0_i32_19 : i32
    %41 = arith.extui %40 : i1 to i32
    %c0_i32_20 = arith.constant 0 : i32
    %42 = arith.cmpi ne, %41, %c0_i32_20 : i32
    scf.if %42 {
      %c0_21 = arith.constant 0 : index
      %c0_22 = arith.constant 0 : index
      %43 = vector.load %arg7[%c0_21, %c0_22] : memref<16x1xf32, #tpu.memory_space<vmem>>, vector<16x1xf32>
      %c0_23 = arith.constant 0 : index
      %c0_24 = arith.constant 0 : index
      %44 = vector.load %arg8[%c0_23, %c0_24] : memref<16x1xf32, #tpu.memory_space<vmem>>, vector<16x1xf32>
      %45 = math.log %44 : vector<16x1xf32>
      %46 = arith.addf %43, %45 : vector<16x1xf32>
      %c0_25 = arith.constant 0 : index
      %c0_26 = arith.constant 0 : index
      %47 = vector.load %arg6[%c0_25, %c0_26] : memref<16x1xf32, #tpu.memory_space<vmem>>, vector<16x1xf32>
      tpu.vector_store %arg6[%c0_25, %c0_26], %46 {strides = array<i32>} : memref<16x1xf32, #tpu.memory_space<vmem>>, vector<16x1xf32>,
    } else {
    }
    return
  }
  func.func @transform_0(%arg0: i32, %arg1: i32, %arg2: memref<1xi32, #tpu.memory_space<smem>>) -> (i32, i32) {
    %c0_i32 = arith.constant 0 : i32
    %c0_i32_0 = arith.constant 0 : i32
    return %arg0, %c0_i32 : i32, i32
  }
  func.func @transform_1(%arg0: i32, %arg1: i32, %arg2: memref<1xi32, #tpu.memory_space<smem>>) -> (i32, i32) {
    %c0_i32 = arith.constant 0 : i32
    %c0_i32_0 = arith.constant 0 : i32
    return %arg0, %c0_i32 : i32, i32
  }
  func.func @transform_2(%arg0: i32, %arg1: i32, %arg2: memref<1xi32, #tpu.memory_space<smem>>) -> (i32, i32) {
    %c0_i32 = arith.constant 0 : i32
    %c0_i32_0 = arith.constant 0 : i32
    return %arg1, %c0_i32 : i32, i32
  }
  func.func @transform_3(%arg0: i32, %arg1: i32, %arg2: memref<1xi32, #tpu.memory_space<smem>>) -> (i32, i32) {
    %c0_i32 = arith.constant 0 : i32
    %c0_i32_0 = arith.constant 0 : i32
    return %arg0, %c0_i32 : i32, i32
  }
}

</mosaic_0001>

<llo_original>
// kernel: tpu_custom_call.1
$region0: #{tpu_custom_call.1}
  #allocation0 [shape = 'u32[]', space=smem, size = 0x4, offset = 0x4, fixed_abs, tag = 'smem constant byte address 0x4 - core index']
  #allocation1 [shape = 'u32[144,128]{1,0:T(1,128)}', space=vmem, size = 0x12000, scoped, tag = 'internal scratch']
  #allocation2 [shape = 'f32[16,1]{1,0:T(8,128)}', space=vmem, size = 0x2000, scoped, tag = 'scratch operand']
  #allocation3 [shape = 'f32[16,1]{1,0:T(8,128)}', space=vmem, size = 0x2000, scoped, tag = 'scratch operand']
  #allocation4 [shape = 's32[1]{0}', space=sflag, size = 0x4, scoped, tag = 'scoped memory for tpu_custom_call.1']
  #allocation5 [shape = 's32[1]{0:T(128)S(6)}', space=smem, size = 0x200, scoped, tag = 'prefetched SMEM operand 0']
  %s0 = inlined_call_operand.<no memory space> [shape: s32[1], index: 0, kind: input, shape index: {}]
  %s1 = inlined_call_operand.hbm [shape: f32[16,128], index: 1, kind: input, shape index: {}]
  %s2 = inlined_call_operand.hbm [shape: f32[16,1], index: 2, kind: input, shape index: {}]
  %s3 = inlined_call_operand.hbm [shape: f32[16,128], index: 3, kind: input, shape index: {}]
  %s4 = inlined_call_operand.hbm [shape: f32[16,1], index: 4, kind: output, shape index: {}]
  %s5 = sld [smem:[#allocation0]]
  $region42: #{tpu_custom_call.1} parent=0
    _
  %s7 = ssub.s32 1, %s5
  %s8 = scalar_select 0, %s7, %s5
  %9 = sst [smem:[#allocation5]] %s0
  $region1: #{tpu_custom_call.1} parent=0
    #allocation6 [shape = 'u8[8192]{0}', space=vmem, size = 0x2000, scoped, tag = 'input window, operand 1, single buffered']
    #allocation7 [shape = 's32[1]{0}', space=sflag, size = 0x4, scoped, tag = 'scoped memory for tpu_custom_call.1']
    #allocation8 [shape = 's32[1]{0}', space=sflag, size = 0x4, scoped, tag = 'scoped memory for tpu_custom_call.1']
    #allocation9 [shape = 'u8[8192]{0}', space=vmem, size = 0x2000, scoped, tag = 'input window, operand 2, single buffered']
    #allocation10 [shape = 's32[1]{0}', space=sflag, size = 0x4, scoped, tag = 'scoped memory for tpu_custom_call.1']
    #allocation11 [shape = 'u8[8192]{0}', space=vmem, size = 0x2000, scoped, tag = 'input window, operand 3, single buffered']
    #allocation12 [shape = 'u8[8192]{0}', space=vmem, size = 0x2000, scoped, tag = 'output window, operand 0, single buffered']
    %10 = vsyncpa [#allocation7], 0
    %11 = vsyncpa [#allocation10], 0
    %12 = vsyncpa [#allocation8], 0
    // Predicated region
    $region2: #{tpu_custom_call.1} parent=1 // pred_check
      _
    $region3: #{tpu_custom_call.1} parent=1 // pred_check_branch
      %14 = sbr.rel (0) target = $region5
    $region4: #{tpu_custom_call.1} parent=1 // pred_region
      %s16 = ssub.s32 256, 256
      %17 = vsyncadd [#allocation7], %s16
      %s18 = sshll.u32 [#allocation6], 4
      %s19 = int_to_ptr.vmem [resolvable:$true] %s18
      %24 = dma.hbm_to_vmem [thread:$0]  %s1, 256, %s19, [#allocation7], 128, 128, 8
    $region5: #{tpu_custom_call.1} parent=1 // pred_fallthru
      _
    // Predicated region
    $region6: #{tpu_custom_call.1} parent=1 // pred_check
      _
    $region7: #{tpu_custom_call.1} parent=1 // pred_check_branch
      %26 = sbr.rel (0) target = $region9
    $region8: #{tpu_custom_call.1} parent=1 // pred_region
      %s28 = ssub.s32 256, 256
      %29 = vsyncadd [#allocation10], %s28
      %s30 = sshll.u32 [#allocation9], 4
      %s31 = int_to_ptr.vmem [resolvable:$true] %s30
      %36 = dma.hbm_to_vmem [thread:$0]  %s2, 256, %s31, [#allocation10], 128, 128, 8
    $region9: #{tpu_custom_call.1} parent=1 // pred_fallthru
      _
    // Predicated region
    $region10: #{tpu_custom_call.1} parent=1 // pred_check
      _
    $region11: #{tpu_custom_call.1} parent=1 // pred_check_branch
      %38 = sbr.rel (0) target = $region13
    $region12: #{tpu_custom_call.1} parent=1 // pred_region
      %s40 = ssub.s32 256, 256
      %41 = vsyncadd [#allocation10], %s40
      %s42 = sshll.u32 [#allocation11], 4
      %s43 = int_to_ptr.vmem [resolvable:$true] %s42
      %48 = dma.hbm_to_vmem [thread:$0]  %s3, 256, %s43, [#allocation10], 128, 128, 8
    $region13: #{tpu_custom_call.1} parent=1 // pred_fallthru
      _
    // Predicated region
    $region14: #{tpu_custom_call.1} parent=1 // pred_check
      _
    $region15: #{tpu_custom_call.1} parent=1 // pred_check_branch
      %50 = sbr.rel (0) target = $region17
    $region16: #{tpu_custom_call.1} parent=1 // pred_region
      %51 = dma.done [#allocation7], 256
    $region17: #{tpu_custom_call.1} parent=1 // pred_fallthru
      _
    // Predicated region
    $region18: #{tpu_custom_call.1} parent=1 // pred_check
      _
    $region19: #{tpu_custom_call.1} parent=1 // pred_check_branch
      %53 = sbr.rel (0) target = $region21
    $region20: #{tpu_custom_call.1} parent=1 // pred_region
      %54 = dma.done [#allocation10], 256
    $region21: #{tpu_custom_call.1} parent=1 // pred_fallthru
      _
    // Predicated region
    $region22: #{tpu_custom_call.1} parent=1 // pred_check
      _
    $region23: #{tpu_custom_call.1} parent=1 // pred_check_branch
      %56 = sbr.rel (0) target = $region25
    $region24: #{tpu_custom_call.1} parent=1 // pred_region
      %57 = dma.done [#allocation10], 256
    $region25: #{tpu_custom_call.1} parent=1 // pred_fallthru
      _
    %s58 = sld [smem:[#allocation5]]
    %p59 = scmp.eq.s32.totalorder 0, 0
    // Predicated region
    $region26: #{tpu_custom_call.1} parent=1 // pred_check
      %p60 = pneg %p59
    $region27: #{tpu_custom_call.1} parent=1 // pred_check_branch
      %62 = sbr.rel (%p60) target = $region29
    $region28: #{tpu_custom_call.1} parent=1 // pred_region
      %vm63 = vcmask 7168
      %64 = vst.msk [vmem:[#allocation2] sm:$0xff] %vm63, 0.0
      %65 = vst.msk [vmem:[#allocation2 + $0x8] sm:$0xff] %vm63, 0.0
      %66 = vst.msk [vmem:[#allocation3] sm:$0xff] %vm63, 1.0
      %67 = vst.msk [vmem:[#allocation3 + $0x8] sm:$0xff] %vm63, 1.0
    $region29: #{tpu_custom_call.1} parent=1 // pred_fallthru
      _
    %v68 = vld [vmem:[#allocation6] sm:$0xff]
    %v69 = vld [vmem:[#allocation6 + $0x8] sm:$0xff]
    %v70 = vld [vmem:[#allocation11] sm:$0xff]
    %v71 = vld [vmem:[#allocation11 + $0x8] sm:$0xff]
    %72 = vmatprep.subr.mxu0 0.0
    %73 = vmatpush1.xpose.msra.mxu0 %v70
    %74 = vmatprep.subr.mxu0 0.0
    %75 = vmatpush1.xpose.msra.mxu0 %v71
    %76 = vmatprep.subr.mxu0 0.0
    %77 = vmatpush1.xpose.msra.mxu0 0.0
    %78 = vmatprep.subr.mxu0 0.0
    %79 = vmatpush1.xpose.msra.mxu0 0.0
    %80 = vmatprep.subr.mxu0 0.0
    %81 = vmatpush1.xpose.msra.mxu0 0.0
    %82 = vmatprep.subr.mxu0 0.0
    %83 = vmatpush1.xpose.msra.mxu0 0.0
    %84 = vmatprep.subr.mxu0 0.0
    %85 = vmatpush1.xpose.msra.mxu0 0.0
    %86 = vmatprep.subr.mxu0 0.0
    %87 = vmatpush1.xpose.msra.mxu0 0.0
    %88 = vmatprep.subr.mxu0 0.0
    %89 = vmatpush1.xpose.msra.mxu0 0.0
    %90 = vmatprep.subr.mxu0 0.0
    %91 = vmatpush1.xpose.msra.mxu0 0.0
    %92 = vmatprep.subr.mxu0 0.0
    %93 = vmatpush1.xpose.msra.mxu0 0.0
    %94 = vmatprep.subr.mxu0 0.0
    %95 = vmatpush1.xpose.msra.mxu0 0.0
    %96 = vmatprep.subr.mxu0 0.0
    %97 = vmatpush1.xpose.msra.mxu0 0.0
    %98 = vmatprep.subr.mxu0 0.0
    %99 = vmatpush1.xpose.msra.mxu0 0.0
    %100 = vmatprep.subr.mxu0 0.0
    %101 = vmatpush1.xpose.msra.mxu0 0.0
    %102 = vmatprep.subr.mxu0 0.0
    %103 = vmatpush1.xpose.msra.mxu0 0.0
    %104 = vmatprep.subr.mxu0 0.0
    %105 = vmatpush1.xpose.msra.mxu0 0.0
    %106 = vmatprep.subr.mxu0 0.0
    %107 = vmatpush1.xpose.msra.mxu0 0.0
    %108 = vmatprep.subr.mxu0 0.0
    %109 = vmatpush1.xpose.msra.mxu0 0.0
    %110 = vmatprep.subr.mxu0 0.0
    %111 = vmatpush1.xpose.msra.mxu0 0.0
    %112 = vmatprep.subr.mxu0 0.0
    %113 = vmatpush1.xpose.msra.mxu0 0.0
    %114 = vmatprep.subr.mxu0 0.0
    %115 = vmatpush1.xpose.msra.mxu0 0.0
    %116 = vmatprep.subr.mxu0 0.0
    %117 = vmatpush1.xpose.msra.mxu0 0.0
    %118 = vmatprep.subr.mxu0 0.0
    %119 = vmatpush1.xpose.msra.mxu0 0.0
    %120 = vmatprep.subr.mxu0 0.0
    %121 = vmatpush1.xpose.msra.mxu0 0.0
    %122 = vmatprep.subr.mxu0 0.0
    %123 = vmatpush1.xpose.msra.mxu0 0.0
    %124 = vmatprep.subr.mxu0 0.0
    %125 = vmatpush1.xpose.msra.mxu0 0.0
    %126 = vmatprep.subr.mxu0 0.0
    %127 = vmatpush1.xpose.msra.mxu0 0.0
    %128 = vmatprep.subr.mxu0 0.0
    %129 = vmatpush1.xpose.msra.mxu0 0.0
    %130 = vmatprep.subr.mxu0 0.0
    %131 = vmatpush1.xpose.msra.mxu0 0.0
    %132 = vmatprep.subr.mxu0 0.0
    %133 = vmatpush1.xpose.msra.mxu0 0.0
    %134 = vmatprep.subr.mxu0 0.0
    %135 = vmatpush1.xpose.msra.mxu0 0.0
    %136 = vmatprep.mubr.f32.mxu0 0.0
    %137 = vmatmul.mubr.f32.gmra.mrb[0].mxu0 %v68
    %v138 = vpop.f32.mrb[0].mxu0
    %v139 = vadd.f32 0.0, %v138
    %v140 = vpop.f32.mrb[0].mxu0
    %141 = vmatprep.mubr.f32.mxu0 0.0
    %142 = vmatmul.mubr.f32.gmra.mrb[0].mxu0 %v69
    %v143 = vpop.f32.mrb[0].mxu0
    %v144 = vadd.f32 0.0, %v143
    %v145 = vpop.f32.mrb[0].mxu0
    %146 = vdwg.mxu0
    %v147 = vld [vmem:[#allocation9] sm:$0xff]
    %v148 = vld [vmem:[#allocation9 + $0x8] sm:$0xff]
    %150 = vset.pattern.permute.xlu0 0
    %151 = vperm.xlu0 %150, %v147
    %v152 = vpop.permute.xlu0 %151
    %155 = vset.pattern.permute.xlu0 0
    %156 = vperm.xlu0 %155, %v148
    %v157 = vpop.permute.xlu0 %156
    %v159 = vsub.f32 %v139, %v152
    %v160 = vsub.f32 %v144, %v157
    %s161 = smul.u32 0, 16
    %v162 = vlaneseq
    %v163 = vshrl.u32 %v162, 7
    %v164 = vadd.s32 %v163, 8
    %v165 = vstv %s161
    %v166 = vadd.s32 %v165, %v163
    %v167 = vadd.s32 %v165, %v164
    %s168 = smul.u32 0, 16
    %v169 = vlaneseq
    %v170 = vand.u32 %v169, 127
    %v171 = vstv %s168
    %v172 = vadd.s32 %v171, %v170
    %vm173 = vcmp.eq.s32.totalorder %v172, %v166
    %vm174 = vcmp.eq.s32.totalorder %v172, %v167
    %v175 = vstv %s58
    %vm176 = vcmp.ge.s32.totalorder %v172, %v175
    %vm177 = vmor %vm173, %vm176
    %vm178 = vmor %vm174, %vm176
    %v179 = vsel %vm177, -1e+30, %v159
    %v180 = vsel %vm178, -1e+30, %v160
    %v181 = vld [vmem:[#allocation2] sm:$0xff]
    %v182 = vld [vmem:[#allocation2 + $0x8] sm:$0xff]
    %vm183 = vcmask 130048
    %v184 = vsel %vm183, %v179, -inf
    %185 = vmax.xlane.f32.xlu0 %v184
    %v186 = vpop.xlane.xlu0 %185
    %v187 = vsel %vm183, %v180, -inf
    %188 = vmax.xlane.f32.xlu0 %v187
    %v189 = vpop.xlane.xlu0 %188
    %v190 = vmax.f32 %v181, %v186
    %v191 = vmax.f32 %v182, %v189
    %v192 = vld [vmem:[#allocation3] sm:$0xff]
    %v193 = vld [vmem:[#allocation3 + $0x8] sm:$0xff]
    %v194 = vsub.f32 %v181, %v190
    %v195 = vsub.f32 %v182, %v191
    %v196 = vmul.f32 %v194, 1.442695
    %v197 = vpow.pop %v196
    %v198 = vmul.f32 %v195, 1.442695
    %v199 = vpow.pop %v198
    %v200 = vmul.f32 %v192, %v197
    %v201 = vmul.f32 %v193, %v199
    %203 = vset.pattern.permute.xlu0 0
    %204 = vperm.xlu0 %203, %v190
    %v205 = vpop.permute.xlu0 %204
    %208 = vset.pattern.permute.xlu0 0
    %209 = vperm.xlu0 %208, %v191
    %v210 = vpop.permute.xlu0 %209
    %v212 = vsub.f32 %v179, %v205
    %v213 = vsub.f32 %v180, %v210
    %v214 = vmul.f32 %v212, 1.442695
    %v215 = vpow.pop %v214
    %v216 = vmul.f32 %v213, 1.442695
    %v217 = vpow.pop %v216
    %v218 = vsel %vm183, %v215, 0.0
    %219 = vadd.xlane.f32.xlu0 %v218
    %v220 = vpop.xlane.xlu0 %219
    %v221 = vsel %vm183, %v217, 0.0
    %222 = vadd.xlane.f32.xlu0 %v221
    %v223 = vpop.xlane.xlu0 %222
    %v224 = vadd.f32 %v200, %v220
    %v225 = vadd.f32 %v201, %v223
    %vm226 = vcmask 7168
    %227 = vst.msk [vmem:[#allocation3] sm:$0xff] %vm226, %v224
    %228 = vst.msk [vmem:[#allocation3 + $0x8] sm:$0xff] %vm226, %v225
    %229 = vst.msk [vmem:[#allocation2] sm:$0xff] %vm226, %v190
    %230 = vst.msk [vmem:[#allocation2 + $0x8] sm:$0xff] %vm226, %v191
    // Predicated region
    $region30: #{tpu_custom_call.1} parent=1 // pred_check
      %p231 = pneg %p59
    $region31: #{tpu_custom_call.1} parent=1 // pred_check_branch
      %233 = sbr.rel (%p231) target = $region33
    $region32: #{tpu_custom_call.1} parent=1 // pred_region
      %v234 = vld [vmem:[#allocation2] sm:$0xff]
      %v235 = vld [vmem:[#allocation2 + $0x8] sm:$0xff]
      %v236 = vld [vmem:[#allocation3] sm:$0xff]
      %v237 = vld [vmem:[#allocation3 + $0x8] sm:$0xff]
      %v238 = vlog2.pop %v236
      %v239 = vmul.f32 %v238, 0.6931472
      %v240 = vlog2.pop %v237
      %v241 = vmul.f32 %v240, 0.6931472
      %v242 = vadd.f32 %v234, %v239
      %v243 = vadd.f32 %v235, %v241
      %244 = vst.msk [vmem:[#allocation12] sm:$0xff] %vm226, %v242
      %245 = vst.msk [vmem:[#allocation12 + $0x8] sm:$0xff] %vm226, %v243
    $region33: #{tpu_custom_call.1} parent=1 // pred_fallthru
      _
    // Predicated region
    $region34: #{tpu_custom_call.1} parent=1 // pred_check
      _
    $region35: #{tpu_custom_call.1} parent=1 // pred_check_branch
      %247 = sbr.rel (0) target = $region37
    $region36: #{tpu_custom_call.1} parent=1 // pred_region
      %s249 = ssub.s32 256, 256
      %250 = vsyncadd [#allocation8], %s249
      %s251 = sshll.u32 [#allocation12], 4
      %s252 = int_to_ptr.vmem [resolvable:$true] %s251
      %257 = dma.vmem_to_hbm [thread:$0]  %s252, 256, %s4, [#allocation8], 128, 128, 8
    $region37: #{tpu_custom_call.1} parent=1 // pred_fallthru
      _
    // Predicated region
    $region38: #{tpu_custom_call.1} parent=1 // pred_check
      _
    $region39: #{tpu_custom_call.1} parent=1 // pred_check_branch
      %259 = sbr.rel (0) target = $region41
    $region40: #{tpu_custom_call.1} parent=1 // pred_region
      %260 = dma.done [#allocation8], 256
    $region41: #{tpu_custom_call.1} parent=1 // pred_fallthru
      _
    %261 = vsyncpa [#allocation7], 1
    %262 = vsyncpa [#allocation10], 1
    %263 = vsyncpa [#allocation8], 1

</llo_original>
